<compile_context>
chip_gen: v5e
topology: v5e:2x2
jax: 0.10.0
libtpu: 0.0.40
codegen_flags: <defaults>
</compile_context>

<pallas_src>
import math
import functools

import jax
import jax.numpy as jnp
from jax import lax
from jax.experimental import pallas as pl
from jax.experimental.pallas import tpu as pltpu
from jax.scipy.special import logsumexp

_NEG_BIG = -1e30
_LANES = 128


def _round_up(x, m):
    return ((x + m - 1) // m) * m


def _cdiv(a, b):
    return (a + b - 1) // b


def _moco_neg_lse_kernel(q_ref, memt_ref, out_ref, m_sc, s_sc,
                         *, tk, k_valid, k_pad):
    """Partial logsumexp of the negative logits over this core's queue slice."""
    ci = pl.program_id(1)            # core split of the queue ("parallel")
    ki = pl.program_id(2)            # streamed queue tiles ("arbitrary", innermost)
    nk = pl.num_programs(2)

    # --- init per-lane online-logsumexp state once per (batch tile, core slice) ---
    @pl.when(ki == 0)
    def _():
        m_sc[...] = jnp.full(m_sc.shape, _NEG_BIG, jnp.float32)
        s_sc[...] = jnp.zeros(s_sc.shape, jnp.float32)

    # --- negative logits for this queue tile (bf16 MXU matmul, f32 accumulate) ---
    # q already carries the 1/T scale (folded in the wrapper).
    neg = lax.dot_general(
        q_ref[...], memt_ref[...],
        dimension_numbers=(((1,), (0,)), ((), ())),
        preferred_element_type=jnp.float32)                  # (TB, TK) f32

    # Mask padded queue columns (static branch: only emitted when K was padded).
    if k_pad != k_valid:
        base = (ci * nk + ki) * tk
        col = base + lax.broadcasted_iota(jnp.int32, neg.shape, 1)
        neg = jnp.where(col < k_valid, neg, _NEG_BIG)

    # --- per-lane online logsumexp: fold TK columns into 128 lanes (VPU only) ---
    g_cnt = tk // _LANES
    tile_m = neg[:, 0:_LANES]
    for g in range(1, g_cnt):
        tile_m = jnp.maximum(tile_m, neg[:, g * _LANES:(g + 1) * _LANES])
    m_prev = m_sc[...]
    m_new = jnp.maximum(m_prev, tile_m)                      # (TB, 128)
    acc = jnp.exp(neg[:, 0:_LANES] - m_new)
    for g in range(1, g_cnt):
        acc = acc + jnp.exp(neg[:, g * _LANES:(g + 1) * _LANES] - m_new)
    s_sc[...] = jnp.exp(m_prev - m_new) * s_sc[...] + acc
    m_sc[...] = m_new

    # --- finalize: single cross-lane combine -> per-row partial logsumexp ---
    @pl.when(ki == nk - 1)
    def _():
        m_lane = m_sc[...]
        big_m = jnp.max(m_lane, axis=-1, keepdims=True)                  # (TB, 1)
        tot = jnp.sum(jnp.exp(m_lane - big_m) * s_sc[...],
                      axis=-1, keepdims=True)
        out_ref[0] = big_m + jnp.log(tot)


def moco_loss(q, k, memory, T=0.07):
    """Scalar MoCo InfoNCE loss, identical to MemoryMoCo.forward (update=False)."""
    B, D = q.shape
    K, D2 = memory.shape
    assert D == D2
    inv_t = 1.0 / float(T)

    # ---- tiling (VMEM-budgeted for v7x's 64 MiB; also fine on v5e/v6e) ----
    D_pad = _round_up(D, 128)                    # lane-dense contraction dim
    B_pad = _round_up(B, 16)                     # bf16-friendly sublane count
    TB = min(B_pad, 256)                         # fills the 256-wide MXU rows
    B_pad = _round_up(B_pad, TB)
    NB = B_pad // TB

    NC = 2                                       # queue split across v7x's 2 TCs
    # ~1 MiB bf16 queue-tile DMAs, balanced across cores, minimal K padding.
    tk_cap = max(256, min(4096, _round_up((1 << 20) // (2 * D_pad), 128)))
    NK = max(1, _cdiv(K, NC * tk_cap))
    TK = min(tk_cap, _round_up(_cdiv(K, NC * NK), 128))
    K_pad = NC * NK * TK

    # ---- operand prep (single fused pass per array on the XLA side) ----
    # Fold 1/T into q, cast the streamed operands to bf16 (halves HBM bytes and
    # uses the native MXU path), pre-transpose the queue to (D_pad, K_pad).
    qp = jnp.pad(q.astype(jnp.float32) * inv_t,
                 ((0, B_pad - B), (0, D_pad - D))).astype(jnp.bfloat16)
    mtp = jnp.pad(memory.astype(jnp.float32),
                  ((0, K_pad - K), (0, D_pad - D))).astype(jnp.bfloat16).T

    kernel = functools.partial(_moco_neg_lse_kernel,
                               tk=TK, k_valid=K, k_pad=K_pad)

    partial_lse = pl.pallas_call(
        kernel,
        out_shape=jax.ShapeDtypeStruct((NC, B_pad, 1), jnp.float32),
        grid_spec=pltpu.PrefetchScalarGridSpec(
            num_scalar_prefetch=0,
            grid=(NB, NC, NK),                               # (batch, core, queue)
            in_specs=[
                pl.BlockSpec((TB, D_pad), lambda bi, ci, ki: (bi, 0)),      # q/T
                pl.BlockSpec((D_pad, TK),
                             lambda bi, ci, ki: (0, ci * NK + ki)),          # queue
            ],
            out_specs=pl.BlockSpec((1, TB, 1), lambda bi, ci, ki: (ci, bi, 0)),
            scratch_shapes=[
                pltpu.VMEM((TB, _LANES), jnp.float32),   # per-lane running max
                pltpu.VMEM((TB, _LANES), jnp.float32),   # per-lane running sum
            ],
        ),
        compiler_params=pltpu.CompilerParams(
            dimension_semantics=("parallel", "parallel", "arbitrary"),
            vmem_limit_bytes=48 * 1024 * 1024,           # safe on v7x's 64 MiB
        ),
    )(qp, mtp)

    # ---- tiny wrapper-side epilogue ----
    # positive logit in f32 (fuses with the pads) + cross-core logsumexp combine.
    pos = jnp.sum(q.astype(jnp.float32) * k.astype(jnp.float32),
                  axis=-1, keepdims=True) * inv_t                    # (B, 1)
    core_lse = jnp.transpose(partial_lse[:, :B, 0])                  # (B, NC)
    row_terms = jnp.concatenate([pos, core_lse], axis=1)             # (B, 1+NC)
    lse = logsumexp(row_terms, axis=1)                               # (B,)
    return jnp.mean(lse - pos[:, 0])


def init_memory(key, K, feat_dim):
    # nn.init.kaiming_uniform_(memory, a=1) on a (K, feat_dim) tensor:
    #   fan_in = feat_dim, gain = sqrt(2 / (1 + a^2)) = 1,
    #   bound  = gain * sqrt(3 / fan_in)
    bound = math.sqrt(3.0 / feat_dim)
    return jax.random.uniform(key, (K, feat_dim), jnp.float32, -bound, bound)


def _reference_loss_f32(q, k, memory, T=0.07):
    """Exact f32 reference of the PyTorch module."""
    l_pos = jnp.sum(q * k, axis=-1, keepdims=True)
    l_neg = q @ memory.T
    logits = jnp.concatenate([l_pos, l_neg], axis=1) / T
    return jnp.mean(logsumexp(logits, axis=1) - logits[:, 0])


def _reference_loss_bf16(q, k, memory, T=0.07):
    """Reference matching the kernel's bf16 operands (f32 accumulation)."""
    inv_t = 1.0 / T
    l_pos = jnp.sum(q * k, axis=-1) * inv_t
    qb = (q * inv_t).astype(jnp.bfloat16).astype(jnp.float32)
    mb = memory.astype(jnp.bfloat16).astype(jnp.float32)
    logits = jnp.concatenate([l_pos[:, None], qb @ mb.T], axis=1)
    return jnp.mean(logsumexp(logits, axis=1) - l_pos)


if __name__ == "__main__":
    # Small shapes consistent with the module:
    #   case 1: one queue tile per core slice + K padding + B padding
    #   case 2: multiple streamed queue tiles per core (exercises the online lse)
    configs = [
        dict(B=6, D=32, K=1000, T=0.07),
        dict(B=10, D=64, K=9000, T=0.07),
    ]
    key = jax.random.PRNGKey(0)
    for cfg in configs:
        key, kq, kk, km = jax.random.split(key, 4)
        q = jax.random.normal(kq, (cfg["B"], cfg["D"]), jnp.float32)
        q = q / jnp.linalg.norm(q, axis=-1, keepdims=True)
        k = jax.random.normal(kk, (cfg["B"], cfg["D"]), jnp.float32)
        k = k / jnp.linalg.norm(k, axis=-1, keepdims=True)
        memory = init_memory(km, cfg["K"], cfg["D"])

        loss = moco_loss(q, k, memory, cfg["T"])
        jax.block_until_ready(loss)

        ref_b = _reference_loss_bf16(q, k, memory, cfg["T"])
        ref_f = _reference_loss_f32(q, k, memory, cfg["T"])
        assert jnp.allclose(loss, ref_b, rtol=1e-3, atol=2e-3), (cfg, loss, ref_b)
        assert jnp.allclose(loss, ref_f, rtol=5e-2, atol=5e-2), (cfg, loss, ref_f)

    # TODO(synk): the in-place queue update (memory.index_copy_ + self.index
    # bookkeeping) is stateful buffer maintenance outside the forward hot path;
    # it would be a separate functional scatter update and is omitted here.
    print("KERNEL_OK")
</pallas_src>

<mosaic_0001>
module attributes {stable_mosaic.version = 11 : i64} {
  func.func @_moco_neg_lse_kernel(%arg0: i32, %arg1: i32, %arg2: i32, %arg3: memref<16x128xbf16, #tpu.memory_space<vmem>>, %arg4: memref<128x512xbf16, #tpu.memory_space<vmem>>, %arg5: memref<1x16x1xf32, #tpu.memory_space<vmem>>, %arg6: memref<16x128xf32, #tpu.memory_space<vmem>>, %arg7: memref<16x128xf32, #tpu.memory_space<vmem>>) attributes {dimension_semantics = [#tpu.dimension_semantics<parallel>, #tpu.dimension_semantics<parallel>, #tpu.dimension_semantics<arbitrary>], iteration_bounds = array<i64: 1, 2, 1>, scalar_prefetch = 0 : i64, scratch_operands = 2 : i64, tpu.core_type = #tpu.core_type<tc>, window_params = [{transform_indices = @transform_0, window_bounds = array<i64: 16, 128>}, {transform_indices = @transform_1, window_bounds = array<i64: 128, 512>}, {transform_indices = @transform_2, window_bounds = array<i64: 1, 16, 1>}]} {
    %c0_i32 = arith.constant 0 : i32
    %0 = arith.cmpi eq, %arg2, %c0_i32 : i32
    %1 = arith.extui %0 : i1 to i32
    %c0_i32_0 = arith.constant 0 : i32
    %2 = arith.cmpi ne, %1, %c0_i32_0 : i32
    scf.if %2 {
      %cst_15 = arith.constant -1.000000e+30 : f32
      %50 = vector.broadcast %cst_15 : f32 to vector<16x128xf32>
      %c0_16 = arith.constant 0 : index
      %c0_17 = arith.constant 0 : index
      %51 = vector.load %arg6[%c0_16, %c0_17] : memref<16x128xf32, #tpu.memory_space<vmem>>, vector<16x128xf32>
      tpu.vector_store %arg6[%c0_16, %c0_17], %50 {strides = array<i32>} : memref<16x128xf32, #tpu.memory_space<vmem>>, vector<16x128xf32>,
      %cst_18 = arith.constant 0.000000e+00 : f32
      %52 = vector.broadcast %cst_18 : f32 to vector<16x128xf32>
      %c0_19 = arith.constant 0 : index
      %c0_20 = arith.constant 0 : index
      %53 = vector.load %arg7[%c0_19, %c0_20] : memref<16x128xf32, #tpu.memory_space<vmem>>, vector<16x128xf32>
      tpu.vector_store %arg7[%c0_19, %c0_20], %52 {strides = array<i32>} : memref<16x128xf32, #tpu.memory_space<vmem>>, vector<16x128xf32>,
    } else {
    }
    %c0 = arith.constant 0 : index
    %c0_1 = arith.constant 0 : index
    %3 = vector.load %arg3[%c0, %c0_1] : memref<16x128xbf16, #tpu.memory_space<vmem>>, vector<16x128xbf16>
    %c0_2 = arith.constant 0 : index
    %c0_3 = arith.constant 0 : index
    %4 = vector.load %arg4[%c0_2, %c0_3] : memref<128x512xbf16, #tpu.memory_space<vmem>>, vector<128x512xbf16>
    %cst = arith.constant dense<0.000000e+00> : vector<16x512xf32>
    %5 = tpu.matmul %3, %4, %cst {dimension_numbers = #tpu.dot_dimension_numbers<[1], [0], [0], [1], [0, 0, 1, 1], [], []>} : vector<16x128xbf16>, vector<128x512xbf16>, vector<16x512xf32> -> vector<16x512xf32>
    %c1_i32 = arith.constant 1 : i32
    %6 = arith.muli %arg1, %c1_i32 : i32
    %7 = arith.addi %6, %arg2 : i32
    %c512_i32 = arith.constant 512 : i32
    %8 = arith.muli %7, %c512_i32 : i32
    %9 = tpu.iota {dimensions = array<i32: 1>} : vector<16x512xi32>
    %10 = vector.broadcast %8 : i32 to vector<16x512xi32>
    %11 = arith.addi %10, %9 : vector<16x512xi32>
    %c1000_i32 = arith.constant 1000 : i32
    %12 = vector.broadcast %c1000_i32 : i32 to vector<16x512xi32>
    %13 = arith.cmpi slt, %11, %12 : vector<16x512xi32>
    %cst_4 = arith.constant -1.000000e+30 : f32
    %14 = vector.broadcast %cst_4 : f32 to vector<16x512xf32>
    %15 = arith.select %13, %5, %14 : vector<16x512xi1>, vector<16x512xf32>
    %16 = vector.extract_strided_slice %15 {offsets = [0, 0], sizes = [16, 128], strides = [1, 1]} : vector<16x512xf32> to vector<16x128xf32>
    %17 = vector.extract_strided_slice %15 {offsets = [0, 128], sizes = [16, 128], strides = [1, 1]} : vector<16x512xf32> to vector<16x128xf32>
    %18 = arith.maximumf %16, %17 : vector<16x128xf32>
    %19 = vector.extract_strided_slice %15 {offsets = [0, 256], sizes = [16, 128], strides = [1, 1]} : vector<16x512xf32> to vector<16x128xf32>
    %20 = arith.maximumf %18, %19 : vector<16x128xf32>
    %21 = vector.extract_strided_slice %15 {offsets = [0, 384], sizes = [16, 128], strides = [1, 1]} : vector<16x512xf32> to vector<16x128xf32>
    %22 = arith.maximumf %20, %21 : vector<16x128xf32>
    %c0_5 = arith.constant 0 : index
    %c0_6 = arith.constant 0 : index
    %23 = vector.load %arg6[%c0_5, %c0_6] : memref<16x128xf32, #tpu.memory_space<vmem>>, vector<16x128xf32>
    %24 = arith.maximumf %23, %22 : vector<16x128xf32>
    %25 = vector.extract_strided_slice %15 {offsets = [0, 0], sizes = [16, 128], strides = [1, 1]} : vector<16x512xf32> to vector<16x128xf32>
    %26 = arith.subf %25, %24 : vector<16x128xf32>
    %27 = math.exp %26 : vector<16x128xf32>
    %28 = vector.extract_strided_slice %15 {offsets = [0, 128], sizes = [16, 128], strides = [1, 1]} : vector<16x512xf32> to vector<16x128xf32>
    %29 = arith.subf %28, %24 : vector<16x128xf32>
    %30 = math.exp %29 : vector<16x128xf32>
    %31 = arith.addf %27, %30 : vector<16x128xf32>
    %32 = vector.extract_strided_slice %15 {offsets = [0, 256], sizes = [16, 128], strides = [1, 1]} : vector<16x512xf32> to vector<16x128xf32>
    %33 = arith.subf %32, %24 : vector<16x128xf32>
    %34 = math.exp %33 : vector<16x128xf32>
    %35 = arith.addf %31, %34 : vector<16x128xf32>
    %36 = vector.extract_strided_slice %15 {offsets = [0, 384], sizes = [16, 128], strides = [1, 1]} : vector<16x512xf32> to vector<16x128xf32>
    %37 = arith.subf %36, %24 : vector<16x128xf32>
    %38 = math.exp %37 : vector<16x128xf32>
    %39 = arith.addf %35, %38 : vector<16x128xf32>
    %40 = arith.subf %23, %24 : vector<16x128xf32>
    %41 = math.exp %40 : vector<16x128xf32>
    %c0_7 = arith.constant 0 : index
    %c0_8 = arith.constant 0 : index
    %42 = vector.load %arg7[%c0_7, %c0_8] : memref<16x128xf32, #tpu.memory_space<vmem>>, vector<16x128xf32>
    %43 = arith.mulf %41, %42 : vector<16x128xf32>
    %44 = arith.addf %43, %39 : vector<16x128xf32>
    %c0_9 = arith.constant 0 : index
    %c0_10 = arith.constant 0 : index
    %45 = vector.load %arg7[%c0_9, %c0_10] : memref<16x128xf32, #tpu.memory_space<vmem>>, vector<16x128xf32>
    tpu.vector_store %arg7[%c0_9, %c0_10], %44 {strides = array<i32>} : memref<16x128xf32, #tpu.memory_space<vmem>>, vector<16x128xf32>,
    %c0_11 = arith.constant 0 : index
    %c0_12 = arith.constant 0 : index
    %46 = vector.load %arg6[%c0_11, %c0_12] : memref<16x128xf32, #tpu.memory_space<vmem>>, vector<16x128xf32>
    tpu.vector_store %arg6[%c0_11, %c0_12], %24 {strides = array<i32>} : memref<16x128xf32, #tpu.memory_space<vmem>>, vector<16x128xf32>,
    %c0_i32_13 = arith.constant 0 : i32
    %47 = arith.cmpi eq, %arg2, %c0_i32_13 : i32
    %48 = arith.extui %47 : i1 to i32
    %c0_i32_14 = arith.constant 0 : i32
    %49 = arith.cmpi ne, %48, %c0_i32_14 : i32
    scf.if %49 {
      %c0_15 = arith.constant 0 : index
      %c0_16 = arith.constant 0 : index
      %50 = vector.load %arg6[%c0_15, %c0_16] : memref<16x128xf32, #tpu.memory_space<vmem>>, vector<16x128xf32>
      %cst_17 = arith.constant dense<0xFF800000> : vector<16xf32>
      %51 = vector.multi_reduction <maximumf>, %50, %cst_17 [1] : vector<16x128xf32> to vector<16xf32>
      %52 = vector.shape_cast %51 : vector<16xf32> to vector<16x1xf32>
      %53 = vector.broadcast %52 : vector<16x1xf32> to vector<16x128xf32>
      %54 = arith.subf %50, %53 : vector<16x128xf32>
      %55 = math.exp %54 : vector<16x128xf32>
      %c0_18 = arith.constant 0 : index
      %c0_19 = arith.constant 0 : index
      %56 = vector.load %arg7[%c0_18, %c0_19] : memref<16x128xf32, #tpu.memory_space<vmem>>, vector<16x128xf32>
      %57 = arith.mulf %55, %56 : vector<16x128xf32>
      %cst_20 = arith.constant dense<0.000000e+00> : vector<16xf32>
      %58 = vector.multi_reduction <add>, %57, %cst_20 [1] : vector<16x128xf32> to vector<16xf32>
      %59 = vector.shape_cast %58 : vector<16xf32> to vector<16x1xf32>
      %60 = math.log %59 : vector<16x1xf32>
      %61 = arith.addf %52, %60 : vector<16x1xf32>
      %c0_21 = arith.constant 0 : index
      %c0_22 = arith.constant 0 : index
      %c0_23 = arith.constant 0 : index
      %62 = vector.load %arg5[%c0_21, %c0_22, %c0_23] : memref<1x16x1xf32, #tpu.memory_space<vmem>>, vector<1x16x1xf32>
      %63 = vector.shape_cast %62 : vector<1x16x1xf32> to vector<16x1xf32>
      %64 = vector.shape_cast %61 : vector<16x1xf32> to vector<1x16x1xf32>
      tpu.vector_store %arg5[%c0_21, %c0_22, %c0_23], %64 {strides = array<i32>} : memref<1x16x1xf32, #tpu.memory_space<vmem>>, vector<1x16x1xf32>,
    } else {
    }
    return
  }
  func.func @transform_0(%arg0: i32, %arg1: i32, %arg2: i32) -> (i32, i32) {
    %c0_i32 = arith.constant 0 : i32
    %c0_i32_0 = arith.constant 0 : i32
    return %arg0, %c0_i32 : i32, i32
  }
  func.func @transform_1(%arg0: i32, %arg1: i32, %arg2: i32) -> (i32, i32) {
    %c1_i32 = arith.constant 1 : i32
    %0 = arith.muli %arg1, %c1_i32 : i32
    %1 = arith.addi %0, %arg2 : i32
    %c0_i32 = arith.constant 0 : i32
    %c0_i32_0 = arith.constant 0 : i32
    return %c0_i32, %1 : i32, i32
  }
  func.func @transform_2(%arg0: i32, %arg1: i32, %arg2: i32) -> (i32, i32, i32) {
    %c0_i32 = arith.constant 0 : i32
    %c0_i32_0 = arith.constant 0 : i32
    return %arg1, %arg0, %c0_i32 : i32, i32, i32
  }
}

</mosaic_0001>

<llo_original>
// kernel: tpu_custom_call.1
$region0: #{tpu_custom_call.1}
  #allocation0 [shape = 'u32[]', space=smem, size = 0x4, offset = 0x4, fixed_abs, tag = 'smem constant byte address 0x4 - core index']
  #allocation1 [shape = 'u32[72,128]{1,0:T(1,128)}', space=vmem, size = 0x9000, scoped, tag = 'internal scratch']
  #allocation2 [shape = 'f32[16,128]{1,0:T(8,128)}', space=vmem, size = 0x2000, scoped, tag = 'scratch operand']
  #allocation3 [shape = 'f32[16,128]{1,0:T(8,128)}', space=vmem, size = 0x2000, scoped, tag = 'scratch operand']
  %s0 = inlined_call_operand.hbm [shape: bf16[16,128], index: 0, kind: input, shape index: {}]
  %s1 = inlined_call_operand.hbm [shape: bf16[128,1024], index: 1, kind: input, shape index: {}]
  %s2 = inlined_call_operand.vmem [shape: f32[2,16,1], index: 2, kind: output, shape index: {}]
  %s3 = sld [smem:[#allocation0]]
  $region57: #{tpu_custom_call.1} parent=0
    _
  %s5 = ssub.s32 1, %s3
  %s6 = scalar_select 0, %s5, %s3
  $region1: #{tpu_custom_call.1} parent=0
    #allocation4 [shape = 'u8[4096]{0}', space=vmem, size = 0x1000, scoped, tag = 'input window, operand 0, single buffered']
    #allocation5 [shape = 's32[2]{0}', space=sflag, size = 0x8, scoped, tag = 'scoped memory for tpu_custom_call.1']
    #allocation6 [shape = 'u8[262144]{0}', space=vmem, size = 0x40000, scoped, tag = 'input window, operand 1']
    #allocation7 [shape = 's32[2]{0}', space=sflag, size = 0x8, scoped, tag = 'scoped memory for tpu_custom_call.1']
    %7 = vsyncpa [#allocation5], 0
    %8 = vsyncpa [#allocation7], 0
    %s9 = scalar_lea.sflag [#allocation7], 1
    %10 = vsyncpa %s9, 0
    loop: start=0, step=1, limit=4
    $region2: #{tpu_custom_call.1} parent=1 // loop_pre_header
      _
    $region3: #{tpu_custom_call.1} parent=1 // loop_header
      %s12 = sphi 0, %s16
      %p13 = scmp.ge.s32.totalorder %s12, 4
      %s19 = sphi 0, %s38
      %s20 = sphi 0, %s34
      %s21 = sphi 0, %s30
      %s22 = sphi 0, %s19
      %s23 = sphi 0, %s20
      %s24 = sphi 0, %s21
      %s25 = sphi 0, %s22
      %s26 = sphi 0, %s23
      %s27 = sphi 0, %s24
      %s41 = sphi 0, %s43
      %s44 = sphi 0, %s41
      %s45 = sphi 0, %s44
      %s61 = sphi 0, %s45
      %s69 = sphi 0, %s71
      %s72 = sphi 0, %s69
      %s73 = sphi 0, %s72
      %s89 = sphi 0, %s73
      %s97 = sphi 0, %s99
      %s100 = sphi 0, %s97
      %s101 = sphi 0, %s100
      %s117 = sphi 0, %s101
    $region4: #{tpu_custom_call.1} parent=1 // loop_header_branch
      %15 = sbr.rel (%p13) target = $region8
    $region5: #{tpu_custom_call.1} parent=1 // loop_body
      %s17 = ssub.s32 %s12, 1
      %s18 = ssub.s32 %s12, 2
      %s28 = sadd.s32 1, %s21
      %p29 = scmp.ge.s32.totalorder %s28, 1
      %s30 = scalar_select %p29, 0, %s28
      %s31 = sadd.s32 1, %s20
      %s32 = scalar_select %p29, %s31, %s20
      %p33 = scmp.ge.s32.totalorder %s32, 2
      %s34 = scalar_select %p33, 0, %s32
      %s35 = sadd.s32 1, %s19
      %s36 = scalar_select %p33, %s35, %s19
      %p37 = scmp.ge.s32.totalorder %s36, 1
      %s38 = scalar_select %p37, 0, %s36
      %s39 = ssub.s32 %s19, %s38
      %p40 = scmp.eq.s32.totalorder %s39, 0
      %s42 = sadd.s32 %s41, 1
      %s43 = scalar_select %p40, %s41, %s42
      %p46 = pneg %p40
      %p47 = scmp.eq.s32.totalorder %s12, 1
      %p48 = por %p46, %p47
      %p49 = scmp.ne.s32.totalorder %s41, %s44
      %p50 = scmp.eq.s32.totalorder %s12, 0
      %p51 = por %p49, %p50
      %p52 = scmp.ne.s32.totalorder %s41, %s44
      %p53 = scmp.eq.s32.totalorder %s17, 1
      %p54 = por %p52, %p53
      %p55 = scmp.ne.s32.totalorder %s44, %s45
      %p56 = scmp.eq.s32.totalorder %s17, 0
      %p57 = por %p55, %p56
      %p58 = scmp.ne.s32.totalorder %s44, %s45
      %p59 = scmp.eq.s32.totalorder %s18, 1
      %p60 = por %p58, %p59
      %p62 = scmp.ne.s32.totalorder %s45, %s61
      %p63 = scmp.eq.s32.totalorder %s18, 0
      %p64 = por %p62, %p63
      %s65 = sadd.s32 %s20, %s21
      %s66 = sadd.s32 %s34, %s30
      %s67 = ssub.s32 %s65, %s66
      %p68 = scmp.eq.s32.totalorder %s67, 0
      %s70 = sadd.s32 %s69, 1
      %s71 = scalar_select %p68, %s69, %s70
      %p74 = pneg %p68
      %p75 = scmp.eq.s32.totalorder %s12, 1
      %p76 = por %p74, %p75
      %p77 = scmp.ne.s32.totalorder %s69, %s72
      %p78 = scmp.eq.s32.totalorder %s12, 0
      %p79 = por %p77, %p78
      %p80 = scmp.ne.s32.totalorder %s69, %s72
      %p81 = scmp.eq.s32.totalorder %s17, 1
      %p82 = por %p80, %p81
      %p83 = scmp.ne.s32.totalorder %s72, %s73
      %p84 = scmp.eq.s32.totalorder %s17, 0
      %p85 = por %p83, %p84
      %p86 = scmp.ne.s32.totalorder %s72, %s73
      %p87 = scmp.eq.s32.totalorder %s18, 1
      %p88 = por %p86, %p87
      %p90 = scmp.ne.s32.totalorder %s73, %s89
      %p91 = scmp.eq.s32.totalorder %s18, 0
      %p92 = por %p90, %p91
      %s93 = ssub.s32 %s20, %s34
      %s94 = ssub.s32 %s19, %s38
      %s95 = sor.u32 %s93, %s94
      %p96 = scmp.eq.s32.totalorder %s95, 0
      %s98 = sadd.s32 %s97, 1
      %s99 = scalar_select %p96, %s97, %s98
      %p102 = pneg %p96
      %p103 = scmp.eq.s32.totalorder %s12, 1
      %p104 = por %p102, %p103
      %p105 = scmp.ne.s32.totalorder %s97, %s100
      %p106 = scmp.eq.s32.totalorder %s12, 0
      %p107 = por %p105, %p106
      %p108 = scmp.ne.s32.totalorder %s97, %s100
      %p109 = scmp.eq.s32.totalorder %s17, 1
      %p110 = por %p108, %p109
      %p111 = scmp.ne.s32.totalorder %s100, %s101
      %p112 = scmp.eq.s32.totalorder %s17, 0
      %p113 = por %p111, %p112
      %p114 = scmp.ne.s32.totalorder %s100, %s101
      %p115 = scmp.eq.s32.totalorder %s18, 1
      %p116 = por %p114, %p115
      %p118 = scmp.ne.s32.totalorder %s101, %s117
      %p119 = scmp.eq.s32.totalorder %s18, 0
      %p120 = por %p118, %p119
      %p121 = scmp.le.s32.totalorder 1, %s12
      %p122 = scmp.lt.s32.totalorder %s12, 3
      %p123 = pnand %p121, %p122
      %p124 = pneg %p123
      // Predicated region
      $region9: #{tpu_custom_call.1} parent=5 // pred_check
        _
      $region10: #{tpu_custom_call.1} parent=5 // pred_check_branch
        %126 = sbr.rel (%p123) target = $region12
      $region11: #{tpu_custom_call.1} parent=5 // pred_region
        %s127 = ssub.s32 %s12, 1
        // Predicated region
        $region13: #{tpu_custom_call.1} parent=11 // pred_check
          %p128 = pneg %p57
        $region14: #{tpu_custom_call.1} parent=11 // pred_check_branch
          %130 = sbr.rel (%p128) target = $region16
        $region15: #{tpu_custom_call.1} parent=11 // pred_region
          %s131 = smul.u32 2, %s22
          %133 = vsyncadd [#allocation5], 0
          %s134 = smul.addr %s131, 4
          %s135 = scalar_lea.hbm %s0, %s134
          %s136 = sshll.u32 %s135, 4
          %s137 = int_to_ptr.hbm [resolvable:$true] %s136
          %s138 = sshll.u32 [#allocation4], 4
          %s139 = int_to_ptr.vmem [resolvable:$true] %s138
          %144 = dma.hbm_to_vmem [thread:$0]  %s137, 128, %s139, [#allocation5], 64, 64, 4
        $region16: #{tpu_custom_call.1} parent=11 // pred_fallthru
          _
      $region12: #{tpu_custom_call.1} parent=5 // pred_fallthru
        _
      %p145 = scmp.lt.s32.totalorder %s12, 2
      // Predicated region
      $region17: #{tpu_custom_call.1} parent=5 // pred_check
        %p146 = pneg %p145
      $region18: #{tpu_custom_call.1} parent=5 // pred_check_branch
        %148 = sbr.rel (%p146) target = $region20
      $region19: #{tpu_custom_call.1} parent=5 // pred_region
        // Predicated region
        $region21: #{tpu_custom_call.1} parent=19 // pred_check
          %p149 = pneg %p79
        $region22: #{tpu_custom_call.1} parent=19 // pred_check_branch
          %151 = sbr.rel (%p149) target = $region24
        $region23: #{tpu_custom_call.1} parent=19 // pred_region
          %s152 = sand.u32 %s69, 1
          %s153 = scalar_lea.sflag [#allocation7], %s152
          %s154 = sand.u32 %s69, 1
          %s155 = smul.addr %s154, 256
          %s156 = scalar_lea.vmem [#allocation6], %s155
          %s157 = sadd.s32 %s20, %s21
          %s158 = smul.u32 4, %s157
          %160 = vsyncadd %s153, 0
          %s161 = smul.addr %s158, 4
          %s162 = scalar_lea.hbm %s1, %s161
          %s163 = sshll.u32 %s162, 4
          %s164 = int_to_ptr.hbm [resolvable:$true] %s163
          %s165 = sshll.u32 %s156, 4
          %s166 = int_to_ptr.vmem [resolvable:$true] %s165
          %171 = dma.hbm_to_vmem [thread:$0]  %s164, 4096, %s166, %s153, 512, 256, 16
        $region24: #{tpu_custom_call.1} parent=19 // pred_fallthru
          _
      $region20: #{tpu_custom_call.1} parent=5 // pred_fallthru
        _
      %p172 = scmp.le.s32.totalorder 1, %s12
      %p173 = scmp.lt.s32.totalorder %s12, 3
      %p174 = pnand %p172, %p173
      %p175 = pneg %p174
      // Predicated region
      $region25: #{tpu_custom_call.1} parent=5 // pred_check
        _
      $region26: #{tpu_custom_call.1} parent=5 // pred_check_branch
        %177 = sbr.rel (%p174) target = $region28
      $region27: #{tpu_custom_call.1} parent=5 // pred_region
        %s178 = ssub.s32 %s12, 1
        // Predicated region
        $region29: #{tpu_custom_call.1} parent=27 // pred_check
          %p179 = pneg %p57
        $region30: #{tpu_custom_call.1} parent=27 // pred_check_branch
          %181 = sbr.rel (%p179) target = $region32
        $region31: #{tpu_custom_call.1} parent=27 // pred_region
          %183 = dma.done [#allocation5], 128
        $region32: #{tpu_custom_call.1} parent=27 // pred_fallthru
          _
        %s184 = sand.u32 %s72, 1
        %s185 = scalar_lea.sflag [#allocation7], %s184
        %s186 = sand.u32 %s72, 1
        %s187 = smul.addr %s186, 256
        %s188 = scalar_lea.vmem [#allocation6], %s187
        // Predicated region
        $region33: #{tpu_custom_call.1} parent=27 // pred_check
          %p189 = pneg %p85
        $region34: #{tpu_custom_call.1} parent=27 // pred_check_branch
          %191 = sbr.rel (%p189) target = $region36
        $region35: #{tpu_custom_call.1} parent=27 // pred_region
          %193 = dma.done %s185, 4096
        $region36: #{tpu_custom_call.1} parent=27 // pred_fallthru
          _
        %p194 = pneg %p57
        %p195 = pneg %p54
        %s196 = sand.u32 %s72, 1
        %s197 = scalar_lea.sflag [#allocation7], %s196
        %s198 = sand.u32 %s72, 1
        %s199 = smul.addr %s198, 256
        %s200 = scalar_lea.vmem [#allocation6], %s199
        %p201 = pneg %p85
        %p202 = pneg %p82
        %p203 = pneg %p113
        %p204 = pneg %p110
        %s205 = smul.u32 2, %s22
        %p206 = scmp.lt.s32.totalorder %s23, 1
        %s207 = scalar_select %p206, %s23, 1
        %p208 = scmp.lt.s32.totalorder %s205, 1
        %s209 = scalar_select %p208, %s205, 1
        %s210 = smul.addr %s207, 2
        %s211 = sadd.s32 %s209, %s210
        %s212 = smul.addr %s211, 8
        %s213 = scalar_lea.vmem %s2, %s212
        %s214 = smul.u32 2, %s22
        %s215 = sadd.s32 %s23, %s24
        %s216 = smul.u32 4, %s215
        %s217 = smul.u32 2, %s22
        %p218 = scmp.lt.s32.totalorder %s23, 1
        %s219 = scalar_select %p218, %s23, 1
        %p220 = scmp.lt.s32.totalorder %s217, 1
        %s221 = scalar_select %p220, %s217, 1
        %s222 = smul.addr %s219, 2
        %s223 = sadd.s32 %s221, %s222
        %s224 = smul.addr %s223, 8
        %s225 = scalar_lea.vmem %s2, %s224
        %s226 = smul.u32 2, %s22
        %p227 = scmp.eq.s32.totalorder %s24, 0
        // Predicated region
        $region37: #{tpu_custom_call.1} parent=27 // pred_check
          %p228 = pneg %p227
        $region38: #{tpu_custom_call.1} parent=27 // pred_check_branch
          %230 = sbr.rel (%p228) target = $region40
        $region39: #{tpu_custom_call.1} parent=27 // pred_region
          %231 = vst [vmem:[#allocation2] sm:$0xff] -1e+30
          %232 = vst [vmem:[#allocation2 + $0x8] sm:$0xff] -1e+30
          %233 = vst [vmem:[#allocation3] sm:$0xff] 0.0
          %234 = vst [vmem:[#allocation3 + $0x8] sm:$0xff] 0.0
        $region40: #{tpu_custom_call.1} parent=27 // pred_fallthru
          _
        %v235 = vld [vmem:[#allocation4] sm:$0xf]
        %v236 = vld [vmem:[#allocation4 + $0x4] sm:$0xf]
        %v237 = vld [vmem:[%s188] sm:$0xff]
        %v238 = vld [vmem:[%s188 + $0x8] sm:$0xff]
        %v239 = vld [vmem:[%s188 + $0x10] sm:$0xff]
        %v240 = vld [vmem:[%s188 + $0x18] sm:$0xff]
        %v241 = vld [vmem:[%s188 + $0x20] sm:$0xff]
        %v242 = vld [vmem:[%s188 + $0x28] sm:$0xff]
        %v243 = vld [vmem:[%s188 + $0x30] sm:$0xff]
        %v244 = vld [vmem:[%s188 + $0x38] sm:$0xff]
        %v245 = vld [vmem:[%s188 + $0x40] sm:$0xff]
        %v246 = vld [vmem:[%s188 + $0x48] sm:$0xff]
        %v247 = vld [vmem:[%s188 + $0x50] sm:$0xff]
        %v248 = vld [vmem:[%s188 + $0x58] sm:$0xff]
        %v249 = vld [vmem:[%s188 + $0x60] sm:$0xff]
        %v250 = vld [vmem:[%s188 + $0x68] sm:$0xff]
        %v251 = vld [vmem:[%s188 + $0x70] sm:$0xff]
        %v252 = vld [vmem:[%s188 + $0x78] sm:$0xff]
        %v253 = vld [vmem:[%s188 + $0x80] sm:$0xff]
        %v254 = vld [vmem:[%s188 + $0x88] sm:$0xff]
        %v255 = vld [vmem:[%s188 + $0x90] sm:$0xff]
        %v256 = vld [vmem:[%s188 + $0x98] sm:$0xff]
        %v257 = vld [vmem:[%s188 + $0xa0] sm:$0xff]
        %v258 = vld [vmem:[%s188 + $0xa8] sm:$0xff]
        %v259 = vld [vmem:[%s188 + $0xb0] sm:$0xff]
        %v260 = vld [vmem:[%s188 + $0xb8] sm:$0xff]
        %v261 = vld [vmem:[%s188 + $0xc0] sm:$0xff]
        %v262 = vld [vmem:[%s188 + $0xc8] sm:$0xff]
        %v263 = vld [vmem:[%s188 + $0xd0] sm:$0xff]
        %v264 = vld [vmem:[%s188 + $0xd8] sm:$0xff]
        %v265 = vld [vmem:[%s188 + $0xe0] sm:$0xff]
        %v266 = vld [vmem:[%s188 + $0xe8] sm:$0xff]
        %v267 = vld [vmem:[%s188 + $0xf0] sm:$0xff]
        %v268 = vld [vmem:[%s188 + $0xf8] sm:$0xff]
        %v271 = vunpack.c.l.b16 %v235
        %v272 = vunpack.c.l.b16 %v236
        %v273 = vpack.c.b16 %v272, %v271
        %v307 = vunpack.c.l.b16 %v237
        %v308 = vunpack.c.h.b16 %v237
        %v309 = vunpack.c.l.b16 %v238
        %v310 = vunpack.c.h.b16 %v238
        %v311 = vunpack.c.l.b16 %v239
        %v312 = vunpack.c.h.b16 %v239
        %v313 = vunpack.c.l.b16 %v240
        %v314 = vunpack.c.h.b16 %v240
        %v315 = vunpack.c.l.b16 %v241
        %v316 = vunpack.c.h.b16 %v241
        %v317 = vunpack.c.l.b16 %v242
        %v318 = vunpack.c.h.b16 %v242
        %v319 = vunpack.c.l.b16 %v243
        %v320 = vunpack.c.h.b16 %v243
        %v321 = vunpack.c.l.b16 %v244
        %v322 = vunpack.c.h.b16 %v244
        %v323 = vunpack.c.l.b16 %v245
        %v324 = vunpack.c.h.b16 %v245
        %v325 = vunpack.c.l.b16 %v246
        %v326 = vunpack.c.h.b16 %v246
        %v327 = vunpack.c.l.b16 %v247
        %v328 = vunpack.c.h.b16 %v247
        %v329 = vunpack.c.l.b16 %v248
        %v330 = vunpack.c.h.b16 %v248
        %v331 = vunpack.c.l.b16 %v249
        %v332 = vunpack.c.h.b16 %v249
        %v333 = vunpack.c.l.b16 %v250
        %v334 = vunpack.c.h.b16 %v250
        %v335 = vunpack.c.l.b16 %v251
        %v336 = vunpack.c.h.b16 %v251
        %v337 = vunpack.c.l.b16 %v252
        %v338 = vunpack.c.h.b16 %v252
        %v339 = vunpack.c.l.b16 %v253
        %v340 = vunpack.c.h.b16 %v253
        %v341 = vunpack.c.l.b16 %v254
        %v342 = vunpack.c.h.b16 %v254
        %v343 = vunpack.c.l.b16 %v255
        %v344 = vunpack.c.h.b16 %v255
        %v345 = vunpack.c.l.b16 %v256
        %v346 = vunpack.c.h.b16 %v256
        %v347 = vunpack.c.l.b16 %v257
        %v348 = vunpack.c.h.b16 %v257
        %v349 = vunpack.c.l.b16 %v258
        %v350 = vunpack.c.h.b16 %v258
        %v351 = vunpack.c.l.b16 %v259
        %v352 = vunpack.c.h.b16 %v259
        %v353 = vunpack.c.l.b16 %v260
        %v354 = vunpack.c.h.b16 %v260
        %v355 = vunpack.c.l.b16 %v261
        %v356 = vunpack.c.h.b16 %v261
        %v357 = vunpack.c.l.b16 %v262
        %v358 = vunpack.c.h.b16 %v262
        %v359 = vunpack.c.l.b16 %v263
        %v360 = vunpack.c.h.b16 %v263
        %v361 = vunpack.c.l.b16 %v264
        %v362 = vunpack.c.h.b16 %v264
        %v363 = vunpack.c.l.b16 %v265
        %v364 = vunpack.c.h.b16 %v265
        %v365 = vunpack.c.l.b16 %v266
        %v366 = vunpack.c.h.b16 %v266
        %v367 = vunpack.c.l.b16 %v267
        %v368 = vunpack.c.h.b16 %v267
        %v369 = vunpack.c.l.b16 %v268
        %v370 = vunpack.c.h.b16 %v268
        %v371 = vpack.c.b16 %v311, %v307
        %v372 = vpack.c.b16 %v312, %v308
        %v373 = vpack.c.b16 %v313, %v309
        %v374 = vpack.c.b16 %v314, %v310
        %v375 = vpack.c.b16 %v319, %v315
        %v376 = vpack.c.b16 %v320, %v316
        %v377 = vpack.c.b16 %v321, %v317
        %v378 = vpack.c.b16 %v322, %v318
        %v379 = vpack.c.b16 %v327, %v323
        %v380 = vpack.c.b16 %v328, %v324
        %v381 = vpack.c.b16 %v329, %v325
        %v382 = vpack.c.b16 %v330, %v326
        %v383 = vpack.c.b16 %v335, %v331
        %v384 = vpack.c.b16 %v336, %v332
        %v385 = vpack.c.b16 %v337, %v333
        %v386 = vpack.c.b16 %v338, %v334
        %v387 = vpack.c.b16 %v343, %v339
        %v388 = vpack.c.b16 %v344, %v340
        %v389 = vpack.c.b16 %v345, %v341
        %v390 = vpack.c.b16 %v346, %v342
        %v391 = vpack.c.b16 %v351, %v347
        %v392 = vpack.c.b16 %v352, %v348
        %v393 = vpack.c.b16 %v353, %v349
        %v394 = vpack.c.b16 %v354, %v350
        %v395 = vpack.c.b16 %v359, %v355
        %v396 = vpack.c.b16 %v360, %v356
        %v397 = vpack.c.b16 %v361, %v357
        %v398 = vpack.c.b16 %v362, %v358
        %v399 = vpack.c.b16 %v367, %v363
        %v400 = vpack.c.b16 %v368, %v364
        %v401 = vpack.c.b16 %v369, %v365
        %v402 = vpack.c.b16 %v370, %v366
        %435 = vmatpush.bf16.msra.mxu0 %v399
        %436 = vmatpush.bf16.msra.mxu0 %v395
        %437 = vmatpush.bf16.msra.mxu0 %v391
        %438 = vmatpush.bf16.msra.mxu0 %v387
        %439 = vmatpush.bf16.msra.mxu0 %v383
        %440 = vmatpush.bf16.msra.mxu0 %v379
        %441 = vmatpush.bf16.msra.mxu0 %v375
        %442 = vmatpush.bf16.msra.mxu0 %v371
        %443 = vmatmul.bf16.gmra.mxu0 %v273
        %v444 = vpop.f32.mrf.mxu0
        %v445 = vadd.f32 0.0, %v444
        %v446 = vpop.f32.mrf.mxu0
        %v447 = vadd.f32 0.0, %v446
        %448 = vdwg.mxu0
        %449 = vmatpush.bf16.msra.mxu0 %v400
        %450 = vmatpush.bf16.msra.mxu0 %v396
        %451 = vmatpush.bf16.msra.mxu0 %v392
        %452 = vmatpush.bf16.msra.mxu0 %v388
        %453 = vmatpush.bf16.msra.mxu0 %v384
        %454 = vmatpush.bf16.msra.mxu0 %v380
        %455 = vmatpush.bf16.msra.mxu0 %v376
        %456 = vmatpush.bf16.msra.mxu0 %v372
        %457 = vmatmul.bf16.gmra.mxu0 %v273
        %v458 = vpop.f32.mrf.mxu0
        %v459 = vadd.f32 0.0, %v458
        %v460 = vpop.f32.mrf.mxu0
        %v461 = vadd.f32 0.0, %v460
        %462 = vdwg.mxu0
        %463 = vmatpush.bf16.msra.mxu0 %v401
        %464 = vmatpush.bf16.msra.mxu0 %v397
        %465 = vmatpush.bf16.msra.mxu0 %v393
        %466 = vmatpush.bf16.msra.mxu0 %v389
        %467 = vmatpush.bf16.msra.mxu0 %v385
        %468 = vmatpush.bf16.msra.mxu0 %v381
        %469 = vmatpush.bf16.msra.mxu0 %v377
        %470 = vmatpush.bf16.msra.mxu0 %v373
        %471 = vmatmul.bf16.gmra.mxu0 %v273
        %v472 = vpop.f32.mrf.mxu0
        %v473 = vadd.f32 0.0, %v472
        %v474 = vpop.f32.mrf.mxu0
        %v475 = vadd.f32 0.0, %v474
        %476 = vdwg.mxu0
        %477 = vmatpush.bf16.msra.mxu0 %v402
        %478 = vmatpush.bf16.msra.mxu0 %v398
        %479 = vmatpush.bf16.msra.mxu0 %v394
        %480 = vmatpush.bf16.msra.mxu0 %v390
        %481 = vmatpush.bf16.msra.mxu0 %v386
        %482 = vmatpush.bf16.msra.mxu0 %v382
        %483 = vmatpush.bf16.msra.mxu0 %v378
        %484 = vmatpush.bf16.msra.mxu0 %v374
        %485 = vmatmul.bf16.gmra.mxu0 %v273
        %v486 = vpop.f32.mrf.mxu0
        %v487 = vadd.f32 0.0, %v486
        %v488 = vpop.f32.mrf.mxu0
        %v489 = vadd.f32 0.0, %v488
        %490 = vdwg.mxu0
        %s491 = sadd.s32 %s23, %s24
        %s492 = smul.u32 %s491, 512
        %v493 = vlaneseq
        %v494 = vand.u32 %v493, 127
        %v495 = vadd.s32 %v494, 128
        %v496 = vadd.s32 %v494, 256
        %v497 = vadd.s32 %v494, 384
        %v498 = vstv %s492
        %v499 = vadd.s32 %v498, %v494
        %v500 = vadd.s32 %v498, %v495
        %v501 = vadd.s32 %v498, %v496
        %v502 = vadd.s32 %v498, %v497
        %vm503 = vcmp.lt.s32.totalorder %v499, 1000
        %vm504 = vcmp.lt.s32.totalorder %v500, 1000
        %vm505 = vcmp.lt.s32.totalorder %v501, 1000
        %vm506 = vcmp.lt.s32.totalorder %v502, 1000
        %v507 = vsel %vm503, %v445, -1e+30
        %v508 = vsel %vm504, %v459, -1e+30
        %v509 = vsel %vm505, %v473, -1e+30
        %v510 = vsel %vm506, %v487, -1e+30
        %v511 = vsel %vm503, %v447, -1e+30
        %v512 = vsel %vm504, %v461, -1e+30
        %v513 = vsel %vm505, %v475, -1e+30
        %v514 = vsel %vm506, %v489, -1e+30
        %v515 = vmax.f32 %v507, %v508
        %v516 = vmax.f32 %v511, %v512
        %v517 = vmax.f32 %v515, %v509
        %v518 = vmax.f32 %v516, %v513
        %v519 = vmax.f32 %v517, %v510
        %v520 = vmax.f32 %v518, %v514
        %v521 = vld [vmem:[#allocation2] sm:$0xff]
        %v522 = vld [vmem:[#allocation2 + $0x8] sm:$0xff]
        %v523 = vmax.f32 %v521, %v519
        %v524 = vmax.f32 %v522, %v520
        %v525 = vsub.f32 %v507, %v523
        %v526 = vsub.f32 %v511, %v524
        %v527 = vmul.f32 %v525, 1.442695
        %v528 = vpow.pop %v527
        %v529 = vmul.f32 %v526, 1.442695
        %v530 = vpow.pop %v529
        %v531 = vsub.f32 %v508, %v523
        %v532 = vsub.f32 %v512, %v524
        %v533 = vmul.f32 %v531, 1.442695
        %v534 = vpow.pop %v533
        %v535 = vmul.f32 %v532, 1.442695
        %v536 = vpow.pop %v535
        %v537 = vadd.f32 %v528, %v534
        %v538 = vadd.f32 %v530, %v536
        %v539 = vsub.f32 %v509, %v523
        %v540 = vsub.f32 %v513, %v524
        %v541 = vmul.f32 %v539, 1.442695
        %v542 = vpow.pop %v541
        %v543 = vmul.f32 %v540, 1.442695
        %v544 = vpow.pop %v543
        %v545 = vadd.f32 %v537, %v542
        %v546 = vadd.f32 %v538, %v544
        %v547 = vsub.f32 %v510, %v523
        %v548 = vsub.f32 %v514, %v524
        %v549 = vmul.f32 %v547, 1.442695
        %v550 = vpow.pop %v549
        %v551 = vmul.f32 %v548, 1.442695
        %v552 = vpow.pop %v551
        %v553 = vadd.f32 %v545, %v550
        %v554 = vadd.f32 %v546, %v552
        %v555 = vsub.f32 %v521, %v523
        %v556 = vsub.f32 %v522, %v524
        %v557 = vmul.f32 %v555, 1.442695
        %v558 = vpow.pop %v557
        %v559 = vmul.f32 %v556, 1.442695
        %v560 = vpow.pop %v559
        %v561 = vld [vmem:[#allocation3] sm:$0xff]
        %v562 = vld [vmem:[#allocation3 + $0x8] sm:$0xff]
        %v563 = vmul.f32 %v558, %v561
        %v564 = vmul.f32 %v560, %v562
        %v565 = vadd.f32 %v563, %v553
        %v566 = vadd.f32 %v564, %v554
        %567 = vst [vmem:[#allocation3] sm:$0xff] %v565
        %568 = vst [vmem:[#allocation3 + $0x8] sm:$0xff] %v566
        %569 = vst [vmem:[#allocation2] sm:$0xff] %v523
        %570 = vst [vmem:[#allocation2 + $0x8] sm:$0xff] %v524
        // Predicated region
        $region41: #{tpu_custom_call.1} parent=27 // pred_check
          %p571 = pneg %p227
        $region42: #{tpu_custom_call.1} parent=27 // pred_check_branch
          %573 = sbr.rel (%p571) target = $region44
        $region43: #{tpu_custom_call.1} parent=27 // pred_region
          %v574 = vld [vmem:[#allocation2] sm:$0xff]
          %v575 = vld [vmem:[#allocation2 + $0x8] sm:$0xff]
          %576 = vmax.xlane.f32.xlu0 %v574
          %v577 = vpop.xlane.xlu0 %576
          %578 = vmax.xlane.f32.xlu0 %v575
          %v579 = vpop.xlane.xlu0 %578
          %v580 = vsub.f32 %v574, %v577
          %v581 = vsub.f32 %v575, %v579
          %v582 = vmul.f32 %v580, 1.442695
          %v583 = vpow.pop %v582
          %v584 = vmul.f32 %v581, 1.442695
          %v585 = vpow.pop %v584
          %v586 = vld [vmem:[#allocation3] sm:$0xff]
          %v587 = vld [vmem:[#allocation3 + $0x8] sm:$0xff]
          %v588 = vmul.f32 %v583, %v586
          %v589 = vmul.f32 %v585, %v587
          %590 = vadd.xlane.f32.xlu0 %v588
          %v591 = vpop.xlane.xlu0 %590
          %592 = vadd.xlane.f32.xlu0 %v589
          %v593 = vpop.xlane.xlu0 %592
          %v594 = vlog2.pop %v591
          %v595 = vmul.f32 %v594, 0.6931472
          %v596 = vlog2.pop %v593
          %v597 = vmul.f32 %v596, 0.6931472
          %v598 = vadd.f32 %v577, %v595
          %v599 = vadd.f32 %v579, %v597
          %vm600 = vcmask 7168
          %601 = vst.msk [vmem:[%s225] sm:$0xff] %vm600, %v598
          %602 = vst.msk [vmem:[%s225 + $0x8] sm:$0xff] %vm600, %v599
        $region44: #{tpu_custom_call.1} parent=27 // pred_fallthru
          _
        %s603 = smul.u32 2, %s22
        %p604 = scmp.lt.s32.totalorder %s23, 1
        %s605 = scalar_select %p604, %s23, 1
        %p606 = scmp.lt.s32.totalorder %s603, 1
        %s607 = scalar_select %p606, %s603, 1
        %s608 = smul.addr %s605, 2
        %s609 = sadd.s32 %s607, %s608
        %s610 = smul.addr %s609, 8
        %s611 = scalar_lea.vmem %s2, %s610
        // Predicated region
        $region45: #{tpu_custom_call.1} parent=27 // pred_check
          %p612 = pneg %p110
        $region46: #{tpu_custom_call.1} parent=27 // pred_check_branch
          %614 = sbr.rel (%p612) target = $region48
        $region47: #{tpu_custom_call.1} parent=27 // pred_region
          %s615 = smul.u32 2, %s22
        $region48: #{tpu_custom_call.1} parent=27 // pred_fallthru
          _
      $region28: #{tpu_custom_call.1} parent=5 // pred_fallthru
        _
      %p616 = scmp.le.s32.totalorder 2, %s12
      // Predicated region
      $region49: #{tpu_custom_call.1} parent=5 // pred_check
        %p617 = pneg %p616
      $region50: #{tpu_custom_call.1} parent=5 // pred_check_branch
        %619 = sbr.rel (%p617) target = $region52
      $region51: #{tpu_custom_call.1} parent=5 // pred_region
        %s620 = ssub.s32 %s12, 2
        // Predicated region
        $region53: #{tpu_custom_call.1} parent=51 // pred_check
          %p621 = pneg %p116
        $region54: #{tpu_custom_call.1} parent=51 // pred_check_branch
          %623 = sbr.rel (%p621) target = $region56
        $region55: #{tpu_custom_call.1} parent=51 // pred_region
          %s624 = smul.u32 2, %s25
          %p625 = scmp.lt.s32.totalorder %s26, 1
          %s626 = scalar_select %p625, %s26, 1
          %p627 = scmp.lt.s32.totalorder %s624, 1
          %s628 = scalar_select %p627, %s624, 1
          %s629 = smul.addr %s626, 2
          %s630 = sadd.s32 %s628, %s629
          %s631 = smul.addr %s630, 8
          %s632 = scalar_lea.vmem %s2, %s631
        $region56: #{tpu_custom_call.1} parent=51 // pred_fallthru
          _
      $region52: #{tpu_custom_call.1} parent=5 // pred_fallthru
        _
    $region6: #{tpu_custom_call.1} parent=1 // loop_footer
      %s16 = sadd.s32 1, %s12
    $region7: #{tpu_custom_call.1} parent=1 // loop_footer_branch
      %11 = sbr.rel target = $region3
    $region8: #{tpu_custom_call.1} parent=1 // loop_exit
      _
    %633 = vsyncpa [#allocation5], 1
    %s634 = scalar_lea.sflag [#allocation5], 1
    %635 = vsyncpa %s634, 1
    %636 = vsyncpa [#allocation7], 1
    %s637 = scalar_lea.sflag [#allocation7], 1
    %638 = vsyncpa %s637, 1

</llo_original>
